<compile_context>
chip_gen: v7x
topology: tpu7x:2x2x1
jax: 0.10.0
libtpu: 0.0.40
codegen_flags: <defaults>
</compile_context>

<pallas_src>
import jax
import jax.numpy as jnp
from jax import lax
from jax.experimental import pallas as pl
from jax.experimental.pallas import tpu as pltpu


def _round_up(a, b):
    return (a + b - 1) // b * b


def _vmem_limit_bytes():
    """Generation-aware VMEM limit; leave headroom for Mosaic scratch."""
    cap = None
    try:
        info = pltpu.get_tpu_info()
        cap = getattr(info, "vmem_capacity_bytes", None)
    except Exception:
        cap = None
    if not cap:
        cap = 64 * 1024 * 1024  # conservative default (v7x per-TensorCore)
    return int(cap * 0.85)


def _make_resident_kernel(n_chunks):
    """Weights VMEM-resident; pf reduction as an in-kernel fori_loop."""

    def kernel(x_ref, w1_ref, b1_ref, w2_ref, b2_ref, o_ref):
        # x_ref:  (tm, hid_p)            input dtype (cast to bf16 here)
        # w1_ref: (nc, hid_p, tk) bf16   b1_ref: (nc, 1, tk) f32
        # w2_ref: (nc, tk, hid_p) bf16   b2_ref: (1, hid_p)  f32
        # o_ref:  (tm, hid_p)            output dtype (x.dtype)
        x = x_ref[...].astype(jnp.bfloat16)
        # Start the f32 accumulator from b2 (added exactly once), hoisted
        # out of the loop (broadcast_in_dim is not CSE'd by JAX).
        acc0 = jnp.broadcast_to(b2_ref[...], o_ref.shape).astype(jnp.float32)

        def body(c, acc):
            # First GEMM block on the MXU (bf16 in, f32 accumulate).
            h = jnp.dot(x, w1_ref[c], preferred_element_type=jnp.float32)
            # Bias + ReLU on the VPU in f32.  Dropout: eval-mode identity.
            h = jnp.maximum(h + b1_ref[c], 0.0)
            # Second GEMM block, accumulated over pf chunks.
            return acc + jnp.dot(h.astype(jnp.bfloat16), w2_ref[c],
                                 preferred_element_type=jnp.float32)

        acc = lax.fori_loop(0, n_chunks, body, acc0, unroll=n_chunks <= 4)
        o_ref[...] = acc.astype(o_ref.dtype)

    return kernel


def _ffn_stream_kernel(x_ref, w1_ref, b1_ref, w2_ref, b2_ref, o_ref):
    """Streaming fallback: pf is a reduction grid axis; accumulate into the
    VMEM-resident f32 output block (no scratch)."""
    k = pl.program_id(1)

    @pl.when(k == 0)
    def _init():
        # b2 added exactly once via the accumulator init.
        o_ref[...] = jnp.broadcast_to(b2_ref[...], o_ref.shape)

    x = x_ref[...].astype(jnp.bfloat16)
    h = jnp.dot(x, w1_ref[...], preferred_element_type=jnp.float32)
    h = jnp.maximum(h + b1_ref[...], 0.0)        # eval-mode dropout = identity
    o_ref[...] += jnp.dot(h.astype(jnp.bfloat16), w2_ref[...],
                          preferred_element_type=jnp.float32)


def positionwise_feedforward(x, w1, b1, w2, b2, *, tm=256, tk_pf=512):
    """x: [batch, seq, hid].  w1: [hid, pf], b1: [pf], w2: [pf, hid], b2: [hid].

    Returns [batch, seq, hid] in x.dtype, equivalent to fc_2(relu(fc_1(x)))
    in eval mode, computed with bf16 MXU operands and f32 accumulation.
    """
    batch, seq, hid = x.shape
    pf = w1.shape[1]
    M = batch * seq
    out_dtype = x.dtype

    hid_p = _round_up(hid, 128)

    # pf chunk size: multiple of 128; pad pf UP to a multiple of tk (the
    # zero-padded W1 columns / b1 entries / W2 rows contribute exactly 0
    # through ReLU, so this is numerically safe).
    tk = min(tk_pf, _round_up(pf, 128))
    pf_pp = _round_up(pf, tk)
    n_chunks = pf_pp // tk

    # Row tile: shrink for tiny inputs; when M is large enough but would give
    # a single tile, split so both TensorCores (v7x) get work.
    tm = min(tm, _round_up(M, 16))
    if M >= 256 and _round_up(M, tm) // tm < 2:
        tm = _round_up((M + 1) // 2, 16)
    M_p = _round_up(M, tm)

    limit_bytes = _vmem_limit_bytes()
    x_isz = jnp.dtype(x.dtype).itemsize
    o_isz = jnp.dtype(out_dtype).itemsize

    # VMEM footprint of the weight-resident path (weights single-buffered).
    resident_bytes = (
        2 * hid_p * pf_pp * 2              # W1 + W2 (bf16, Buffered(1))
        + pf_pp * 4 + hid_p * 4            # biases (f32)
        + 2 * tm * hid_p * x_isz           # x block, double-buffered
        + 2 * tm * hid_p * o_isz           # out block, double-buffered
        + tm * hid_p * 4                   # f32 accumulator carry
        + 2 * tm * tk * 4                  # per-chunk intermediate h (+slack)
    )
    use_resident = resident_bytes <= int(0.8 * limit_bytes)

    if use_resident:
        # ---------------- Weight-resident path (primary) ----------------
        x2 = x.reshape(M, hid)
        if (M_p, hid_p) != (M, hid):
            x2 = jnp.pad(x2, ((0, M_p - M), (0, hid_p - hid)))

        # Weight prep (pad -> bf16 -> pf-chunked).  For serving, hoist/cache
        # these outside the per-call path.
        w1c = jnp.pad(w1, ((0, hid_p - hid), (0, pf_pp - pf))).astype(jnp.bfloat16)
        w1c = w1c.reshape(hid_p, n_chunks, tk).transpose(1, 0, 2)   # (nc, hid_p, tk)
        b1c = jnp.pad(b1, (0, pf_pp - pf)).astype(jnp.float32).reshape(n_chunks, 1, tk)
        w2c = jnp.pad(w2, ((0, pf_pp - pf), (0, hid_p - hid))).astype(jnp.bfloat16)
        w2c = w2c.reshape(n_chunks, tk, hid_p)                      # (nc, tk, hid_p)
        b2p = jnp.pad(b2, (0, hid_p - hid)).astype(jnp.float32).reshape(1, hid_p)

        grid = (M_p // tm,)
        flops = 4 * M_p * hid_p * pf_pp
        bytes_accessed = (M_p * hid_p * (x_isz + o_isz)
                          + 2 * hid_p * pf_pp * 2 + pf_pp * 4 + hid_p * 4)

        out2 = pl.pallas_call(
            _make_resident_kernel(n_chunks),
            out_shape=jax.ShapeDtypeStruct((M_p, hid_p), out_dtype),
            grid_spec=pltpu.PrefetchScalarGridSpec(
                num_scalar_prefetch=0,
                grid=grid,
                in_specs=[
                    pl.BlockSpec((tm, hid_p), lambda i: (i, 0)),           # x rows
                    pl.BlockSpec((n_chunks, hid_p, tk), lambda i: (0, 0, 0),
                                 pipeline_mode=pl.Buffered(1)),            # W1 resident
                    pl.BlockSpec((n_chunks, 1, tk), lambda i: (0, 0, 0)),  # b1
                    pl.BlockSpec((n_chunks, tk, hid_p), lambda i: (0, 0, 0),
                                 pipeline_mode=pl.Buffered(1)),            # W2 resident
                    pl.BlockSpec((1, hid_p), lambda i: (0, 0)),            # b2
                ],
                out_specs=pl.BlockSpec((tm, hid_p), lambda i: (i, 0)),
            ),
            compiler_params=pltpu.CompilerParams(
                dimension_semantics=("parallel",),
                vmem_limit_bytes=limit_bytes,
            ),
            cost_estimate=pl.CostEstimate(flops=flops, transcendentals=0,
                                          bytes_accessed=bytes_accessed),
        )(x2, w1c, b1c, w2c, b2p)

        if (M_p, hid_p) != (M, hid):
            out2 = out2[:M, :hid]
        return out2.reshape(batch, seq, hid)

    # ---------------- Streaming fallback (weights exceed VMEM) ----------------
    tm_s = min(512, _round_up(M, 16))

    def _stream_bytes(tms, tkc):
        return (2 * tms * hid_p * x_isz              # x block, double-buffered
                + 4 * hid_p * tkc * 2                # W1 + W2 blocks, double-buffered
                + 2 * tms * hid_p * 4                # f32 output block, double-buffered
                + tms * tkc * 4)                     # h intermediate

    tk_s = 128
    for cand in (1024, 512, 256, 128):
        if _stream_bytes(tm_s, cand) <= int(0.8 * limit_bytes):
            tk_s = cand
            break
    while _stream_bytes(tm_s, tk_s) > int(0.8 * limit_bytes) and tm_s > 16:
        tm_s = max(16, tm_s // 2)

    pf_ps = _round_up(pf, tk_s)
    M_ps = _round_up(M, tm_s)

    x2 = x.reshape(M, hid)
    if (M_ps, hid_p) != (M, hid):
        x2 = jnp.pad(x2, ((0, M_ps - M), (0, hid_p - hid)))
    w1p = jnp.pad(w1, ((0, hid_p - hid), (0, pf_ps - pf))).astype(jnp.bfloat16)
    b1p = jnp.pad(b1, (0, pf_ps - pf)).astype(jnp.float32).reshape(1, pf_ps)
    w2p = jnp.pad(w2, ((0, pf_ps - pf), (0, hid_p - hid))).astype(jnp.bfloat16)
    b2p = jnp.pad(b2, (0, hid_p - hid)).astype(jnp.float32).reshape(1, hid_p)

    grid = (M_ps // tm_s, pf_ps // tk_s)
    flops = 4 * M_ps * hid_p * pf_ps
    bytes_accessed = (M_ps * hid_p * (x_isz + 4)
                      + grid[0] * 2 * hid_p * pf_ps * 2
                      + pf_ps * 4 + hid_p * 4)

    out2 = pl.pallas_call(
        _ffn_stream_kernel,
        out_shape=jax.ShapeDtypeStruct((M_ps, hid_p), jnp.float32),
        grid_spec=pltpu.PrefetchScalarGridSpec(
            num_scalar_prefetch=0,
            grid=grid,
            in_specs=[
                pl.BlockSpec((tm_s, hid_p), lambda i, k: (i, 0)),   # x rows
                pl.BlockSpec((hid_p, tk_s), lambda i, k: (0, k)),   # W1 pf-block
                pl.BlockSpec((1, tk_s),     lambda i, k: (0, k)),   # b1 pf-block
                pl.BlockSpec((tk_s, hid_p), lambda i, k: (k, 0)),   # W2 pf-block
                pl.BlockSpec((1, hid_p),    lambda i, k: (0, 0)),   # b2 (resident)
            ],
            out_specs=pl.BlockSpec((tm_s, hid_p), lambda i, k: (i, 0)),
        ),
        compiler_params=pltpu.CompilerParams(
            dimension_semantics=("parallel", "arbitrary"),
            vmem_limit_bytes=limit_bytes,
        ),
        cost_estimate=pl.CostEstimate(flops=flops, transcendentals=0,
                                      bytes_accessed=bytes_accessed),
    )(x2, w1p, b1p, w2p, b2p)

    return out2[:M, :hid].astype(out_dtype).reshape(batch, seq, hid)


if __name__ == "__main__":
    # Small, deterministic setup: batch=2, seq=8, hid_dim=32, pf_dim=64
    batch, seq, hid_dim, pf_dim = 2, 8, 32, 64
    key = jax.random.PRNGKey(0)
    kx, k1, k2, k3, k4 = jax.random.split(key, 5)

    x = jax.random.normal(kx, (batch, seq, hid_dim), dtype=jnp.float32)

    # PyTorch nn.Linear default init: U(-1/sqrt(fan_in), 1/sqrt(fan_in)).
    # fc_1: Linear(hid_dim, pf_dim) -> stored transposed [hid, pf]
    lim1 = 1.0 / (hid_dim ** 0.5)
    w1 = jax.random.uniform(k1, (hid_dim, pf_dim), jnp.float32, -lim1, lim1)
    b1 = jax.random.uniform(k2, (pf_dim,), jnp.float32, -lim1, lim1)
    # fc_2: Linear(pf_dim, hid_dim) -> stored transposed [pf, hid]
    lim2 = 1.0 / (pf_dim ** 0.5)
    w2 = jax.random.uniform(k3, (pf_dim, hid_dim), jnp.float32, -lim2, lim2)
    b2 = jax.random.uniform(k4, (hid_dim,), jnp.float32, -lim2, lim2)

    out = positionwise_feedforward(x, w1, b1, w2, b2)
    out = jax.block_until_ready(out)
    assert out.shape == (batch, seq, hid_dim)
    assert out.dtype == x.dtype

    # Reference 1: bf16-mirrored math (same precision as the kernel) -> tight.
    h_ref = jnp.dot(x.astype(jnp.bfloat16), w1.astype(jnp.bfloat16),
                    preferred_element_type=jnp.float32) + b1
    h_ref = jnp.maximum(h_ref, 0.0)
    ref_bf16 = jnp.dot(h_ref.astype(jnp.bfloat16), w2.astype(jnp.bfloat16),
                       preferred_element_type=jnp.float32) + b2
    assert jnp.allclose(out, ref_bf16, atol=1e-3, rtol=1e-3), \
        "mismatch vs bf16-mirrored reference"

    # Reference 2: full-f32 eval-mode forward -> loose (bf16 MXU rounding).
    ref_f32 = jnp.maximum(x @ w1 + b1, 0.0) @ w2 + b2
    assert jnp.allclose(out, ref_f32, atol=5e-2, rtol=5e-2), \
        "mismatch vs f32 reference"

    print("KERNEL_OK")
</pallas_src>

<mosaic_0001>
module attributes {stable_mosaic.version = 11 : i64} {
  func.func @kernel(%arg0: i32, %arg1: memref<16x128xf32, #tpu.memory_space<vmem>>, %arg2: memref<1x128x128xbf16, #tpu.memory_space<vmem>>, %arg3: memref<1x1x128xf32, #tpu.memory_space<vmem>>, %arg4: memref<1x128x128xbf16, #tpu.memory_space<vmem>>, %arg5: memref<1x128xf32, #tpu.memory_space<vmem>>, %arg6: memref<16x128xf32, #tpu.memory_space<vmem>>) attributes {dimension_semantics = [#tpu.dimension_semantics<parallel>], iteration_bounds = array<i64: 1>, scalar_prefetch = 0 : i64, scratch_operands = 0 : i64, tpu.core_type = #tpu.core_type<tc>, window_params = [{transform_indices = @transform_0, window_bounds = array<i64: 16, 128>}, {pipeline_mode = #tpu.pipeline_mode<synchronous>, transform_indices = @transform_1, window_bounds = array<i64: 1, 128, 128>}, {pipeline_mode = #tpu.pipeline_mode<synchronous>, transform_indices = @transform_2, window_bounds = array<i64: 1, 1, 128>}, {pipeline_mode = #tpu.pipeline_mode<synchronous>, transform_indices = @transform_3, window_bounds = array<i64: 1, 128, 128>}, {pipeline_mode = #tpu.pipeline_mode<synchronous>, transform_indices = @transform_4, window_bounds = array<i64: 1, 128>}, {transform_indices = @transform_5, window_bounds = array<i64: 16, 128>}]} {
    %c0 = arith.constant 0 : index
    %c0_0 = arith.constant 0 : index
    %0 = vector.load %arg1[%c0, %c0_0] : memref<16x128xf32, #tpu.memory_space<vmem>>, vector<16x128xf32>
    %1 = arith.truncf %0 : vector<16x128xf32> to vector<16x128xbf16>
    %c0_1 = arith.constant 0 : index
    %c0_2 = arith.constant 0 : index
    %2 = vector.load %arg5[%c0_1, %c0_2] : memref<1x128xf32, #tpu.memory_space<vmem>>, vector<1x128xf32>
    %3 = vector.shape_cast %2 : vector<1x128xf32> to vector<1x128xf32>
    %4 = vector.broadcast %3 : vector<1x128xf32> to vector<16x128xf32>
    %c0_i32 = arith.constant 0 : i32
    %5 = arith.index_cast %c0_i32 : i32 to index
    %c0_3 = arith.constant 0 : index
    %c0_4 = arith.constant 0 : index
    %6 = vector.load %arg2[%5, %c0_3, %c0_4] : memref<1x128x128xbf16, #tpu.memory_space<vmem>>, vector<1x128x128xbf16>
    %7 = vector.shape_cast %6 : vector<1x128x128xbf16> to vector<128x128xbf16>
    %cst = arith.constant dense<0.000000e+00> : vector<16x128xf32>
    %8 = tpu.matmul %1, %7, %cst {dimension_numbers = #tpu.dot_dimension_numbers<[1], [0], [0], [1], [0, 0, 1, 1], [], []>} : vector<16x128xbf16>, vector<128x128xbf16>, vector<16x128xf32> -> vector<16x128xf32>
    %9 = arith.index_cast %c0_i32 : i32 to index
    %c0_5 = arith.constant 0 : index
    %c0_6 = arith.constant 0 : index
    %10 = vector.load %arg3[%9, %c0_5, %c0_6] : memref<1x1x128xf32, #tpu.memory_space<vmem>>, vector<1x1x128xf32>
    %11 = vector.shape_cast %10 : vector<1x1x128xf32> to vector<1x128xf32>
    %12 = vector.broadcast %11 : vector<1x128xf32> to vector<16x128xf32>
    %13 = arith.addf %8, %12 : vector<16x128xf32>
    %cst_7 = arith.constant 0.000000e+00 : f32
    %14 = vector.broadcast %cst_7 : f32 to vector<16x128xf32>
    %15 = arith.maximumf %13, %14 : vector<16x128xf32>
    %16 = arith.truncf %15 : vector<16x128xf32> to vector<16x128xbf16>
    %17 = arith.index_cast %c0_i32 : i32 to index
    %c0_8 = arith.constant 0 : index
    %c0_9 = arith.constant 0 : index
    %18 = vector.load %arg4[%17, %c0_8, %c0_9] : memref<1x128x128xbf16, #tpu.memory_space<vmem>>, vector<1x128x128xbf16>
    %19 = vector.shape_cast %18 : vector<1x128x128xbf16> to vector<128x128xbf16>
    %cst_10 = arith.constant dense<0.000000e+00> : vector<16x128xf32>
    %20 = tpu.matmul %16, %19, %cst_10 {dimension_numbers = #tpu.dot_dimension_numbers<[1], [0], [0], [1], [0, 0, 1, 1], [], []>} : vector<16x128xbf16>, vector<128x128xbf16>, vector<16x128xf32> -> vector<16x128xf32>
    %21 = arith.addf %4, %20 : vector<16x128xf32>
    %c1_i32 = arith.constant 1 : i32
    %c0_11 = arith.constant 0 : index
    %c0_12 = arith.constant 0 : index
    %22 = vector.load %arg6[%c0_11, %c0_12] : memref<16x128xf32, #tpu.memory_space<vmem>>, vector<16x128xf32>
    tpu.vector_store %arg6[%c0_11, %c0_12], %21 {strides = array<i32>} : memref<16x128xf32, #tpu.memory_space<vmem>>, vector<16x128xf32>,
    return
  }
  func.func @transform_0(%arg0: i32) -> (i32, i32) {
    %c0_i32 = arith.constant 0 : i32
    %c0_i32_0 = arith.constant 0 : i32
    return %arg0, %c0_i32 : i32, i32
  }
  func.func @transform_1(%arg0: i32) -> (i32, i32, i32) {
    %c0_i32 = arith.constant 0 : i32
    %c0_i32_0 = arith.constant 0 : i32
    %c0_i32_1 = arith.constant 0 : i32
    %c0_i32_2 = arith.constant 0 : i32
    return %c0_i32, %c0_i32_0, %c0_i32_1 : i32, i32, i32
  }
  func.func @transform_2(%arg0: i32) -> (i32, i32, i32) {
    %c0_i32 = arith.constant 0 : i32
    %c0_i32_0 = arith.constant 0 : i32
    %c0_i32_1 = arith.constant 0 : i32
    %c0_i32_2 = arith.constant 0 : i32
    return %c0_i32, %c0_i32_0, %c0_i32_1 : i32, i32, i32
  }
  func.func @transform_3(%arg0: i32) -> (i32, i32, i32) {
    %c0_i32 = arith.constant 0 : i32
    %c0_i32_0 = arith.constant 0 : i32
    %c0_i32_1 = arith.constant 0 : i32
    %c0_i32_2 = arith.constant 0 : i32
    return %c0_i32, %c0_i32_0, %c0_i32_1 : i32, i32, i32
  }
  func.func @transform_4(%arg0: i32) -> (i32, i32) {
    %c0_i32 = arith.constant 0 : i32
    %c0_i32_0 = arith.constant 0 : i32
    %c0_i32_1 = arith.constant 0 : i32
    return %c0_i32, %c0_i32_0 : i32, i32
  }
  func.func @transform_5(%arg0: i32) -> (i32, i32) {
    %c0_i32 = arith.constant 0 : i32
    %c0_i32_0 = arith.constant 0 : i32
    return %arg0, %c0_i32 : i32, i32
  }
}

</mosaic_0001>

<llo_original>
// kernel: tpu_custom_call.1
$region0: #{tpu_custom_call.1}
  #allocation0 [shape = 'u32[]', space=smem, size = 0x4, offset = 0x4, fixed_abs, tag = 'smem constant byte address 0x4 - core index']
  #allocation1 [shape = 'u32[144,128]{1,0:T(1,128)}', space=vmem, size = 0x12000, scoped, tag = 'internal scratch']
  %s0 = inlined_call_operand.hbm [shape: f32[16,128], index: 0, kind: input, shape index: {}]
  %s1 = inlined_call_operand.hbm [shape: bf16[1,128,128], index: 1, kind: input, shape index: {}]
  %s2 = inlined_call_operand.vmem [shape: f32[1,1,128], index: 2, kind: input, shape index: {}]
  %s3 = inlined_call_operand.hbm [shape: bf16[1,128,128], index: 3, kind: input, shape index: {}]
  %s4 = inlined_call_operand.vmem [shape: f32[1,128], index: 4, kind: input, shape index: {}]
  %s5 = inlined_call_operand.hbm [shape: f32[16,128], index: 5, kind: output, shape index: {}]
  %s6 = sld [smem:[#allocation0]]
  $region42: #{tpu_custom_call.1} parent=0
    _
  %s8 = ssub.s32 1, %s6
  %s9 = scalar_select 0, %s8, %s6
  $region1: #{tpu_custom_call.1} parent=0
    #allocation2 [shape = 'u8[8192]{0}', space=vmem, size = 0x2000, scoped, tag = 'input window, operand 0, single buffered']
    #allocation3 [shape = 's32[1]{0}', space=sflag, size = 0x4, scoped, tag = 'scoped memory for tpu_custom_call.1']
    #allocation4 [shape = 's32[1]{0}', space=sflag, size = 0x4, scoped, tag = 'scoped memory for tpu_custom_call.1']
    #allocation5 [shape = 'u8[32768]{0}', space=vmem, size = 0x8000, scoped, tag = 'input window, operand 1, single buffered']
    #allocation6 [shape = 's32[1]{0}', space=sflag, size = 0x4, scoped, tag = 'scoped memory for tpu_custom_call.1']
    #allocation7 [shape = 'u8[32768]{0}', space=vmem, size = 0x8000, scoped, tag = 'input window, operand 3, single buffered']
    #allocation8 [shape = 'u8[8192]{0}', space=vmem, size = 0x2000, scoped, tag = 'output window, operand 0, single buffered']
    %10 = vsyncpa [#allocation3], 0
    %11 = vsyncpa [#allocation6], 0
    %12 = vsyncpa [#allocation4], 0
    // Predicated region
    $region2: #{tpu_custom_call.1} parent=1 // pred_check
      _
    $region3: #{tpu_custom_call.1} parent=1 // pred_check_branch
      %14 = sbr.rel (0) target = $region5
    $region4: #{tpu_custom_call.1} parent=1 // pred_region
      %s16 = ssub.s32 256, 256
      %17 = vsyncadd [#allocation3], %s16
      %s18 = sshll.u32 [#allocation2], 4
      %s19 = int_to_ptr.vmem [resolvable:$true] %s18
      %24 = dma.hbm_to_vmem [thread:$0]  %s0, 256, %s19, [#allocation3], 128, 128, 8
    $region5: #{tpu_custom_call.1} parent=1 // pred_fallthru
      _
    // Predicated region
    $region6: #{tpu_custom_call.1} parent=1 // pred_check
      _
    $region7: #{tpu_custom_call.1} parent=1 // pred_check_branch
      %26 = sbr.rel (0) target = $region9
    $region8: #{tpu_custom_call.1} parent=1 // pred_region
      %s28 = ssub.s32 1024, 1024
      %29 = vsyncadd [#allocation6], %s28
      %s30 = sshll.u32 [#allocation5], 4
      %s31 = int_to_ptr.vmem [resolvable:$true] %s30
      %36 = dma.hbm_to_vmem [thread:$0]  %s1, 1024, %s31, [#allocation6], 64, 64, 4
    $region9: #{tpu_custom_call.1} parent=1 // pred_fallthru
      _
    // Predicated region
    $region10: #{tpu_custom_call.1} parent=1 // pred_check
      _
    $region11: #{tpu_custom_call.1} parent=1 // pred_check_branch
      %38 = sbr.rel (0) target = $region13
    $region12: #{tpu_custom_call.1} parent=1 // pred_region
      _
    $region13: #{tpu_custom_call.1} parent=1 // pred_fallthru
      _
    // Predicated region
    $region14: #{tpu_custom_call.1} parent=1 // pred_check
      _
    $region15: #{tpu_custom_call.1} parent=1 // pred_check_branch
      %40 = sbr.rel (0) target = $region17
    $region16: #{tpu_custom_call.1} parent=1 // pred_region
      %s42 = ssub.s32 1024, 1024
      %43 = vsyncadd [#allocation6], %s42
      %s44 = sshll.u32 [#allocation7], 4
      %s45 = int_to_ptr.vmem [resolvable:$true] %s44
      %50 = dma.hbm_to_vmem [thread:$0]  %s3, 1024, %s45, [#allocation6], 64, 64, 4
    $region17: #{tpu_custom_call.1} parent=1 // pred_fallthru
      _
    // Predicated region
    $region18: #{tpu_custom_call.1} parent=1 // pred_check
      _
    $region19: #{tpu_custom_call.1} parent=1 // pred_check_branch
      %52 = sbr.rel (0) target = $region21
    $region20: #{tpu_custom_call.1} parent=1 // pred_region
      _
    $region21: #{tpu_custom_call.1} parent=1 // pred_fallthru
      _
    // Predicated region
    $region22: #{tpu_custom_call.1} parent=1 // pred_check
      _
    $region23: #{tpu_custom_call.1} parent=1 // pred_check_branch
      %54 = sbr.rel (0) target = $region25
    $region24: #{tpu_custom_call.1} parent=1 // pred_region
      %55 = dma.done [#allocation3], 256
    $region25: #{tpu_custom_call.1} parent=1 // pred_fallthru
      _
    // Predicated region
    $region26: #{tpu_custom_call.1} parent=1 // pred_check
      _
    $region27: #{tpu_custom_call.1} parent=1 // pred_check_branch
      %57 = sbr.rel (0) target = $region29
    $region28: #{tpu_custom_call.1} parent=1 // pred_region
      %58 = dma.done [#allocation6], 1024
    $region29: #{tpu_custom_call.1} parent=1 // pred_fallthru
      _
    // Predicated region
    $region30: #{tpu_custom_call.1} parent=1 // pred_check
      _
    $region31: #{tpu_custom_call.1} parent=1 // pred_check_branch
      %60 = sbr.rel (0) target = $region33
    $region32: #{tpu_custom_call.1} parent=1 // pred_region
      %61 = dma.done [#allocation6], 1024
    $region33: #{tpu_custom_call.1} parent=1 // pred_fallthru
      _
    %v63 = vld [vmem:[#allocation2] sm:$0xff]
    %v64 = vld [vmem:[#allocation2 + $0x8] sm:$0xff]
    %v65 = vpack.c.bf16 %v64, %v63
    %v66 = vld [vmem:[%s4] sm:$0x1]
    %v68 = vlaneseq
    %v69 = vshrl.u32 %v68, 7
    %v70 = vsub.s32 0, %v69
    %v71 = vrot.slane %v66, %v70
    %v73 = vld [vmem:[#allocation5] sm:$0xf]
    %v74 = vld [vmem:[#allocation5 + $0x4] sm:$0xf]
    %v75 = vld [vmem:[#allocation5 + $0x8] sm:$0xf]
    %v76 = vld [vmem:[#allocation5 + $0xc] sm:$0xf]
    %v77 = vld [vmem:[#allocation5 + $0x10] sm:$0xf]
    %v78 = vld [vmem:[#allocation5 + $0x14] sm:$0xf]
    %v79 = vld [vmem:[#allocation5 + $0x18] sm:$0xf]
    %v80 = vld [vmem:[#allocation5 + $0x1c] sm:$0xf]
    %v81 = vld [vmem:[#allocation5 + $0x20] sm:$0xf]
    %v82 = vld [vmem:[#allocation5 + $0x24] sm:$0xf]
    %v83 = vld [vmem:[#allocation5 + $0x28] sm:$0xf]
    %v84 = vld [vmem:[#allocation5 + $0x2c] sm:$0xf]
    %v85 = vld [vmem:[#allocation5 + $0x30] sm:$0xf]
    %v86 = vld [vmem:[#allocation5 + $0x34] sm:$0xf]
    %v87 = vld [vmem:[#allocation5 + $0x38] sm:$0xf]
    %v88 = vld [vmem:[#allocation5 + $0x3c] sm:$0xf]
    %v89 = vld [vmem:[%s2] sm:$0x1]
    %v91 = vlaneseq
    %v92 = vshrl.u32 %v91, 7
    %v93 = vsub.s32 0, %v92
    %v94 = vrot.slane %v89, %v93
    %v112 = vunpack.c.l.b16 %v73
    %v113 = vunpack.c.l.b16 %v74
    %v114 = vunpack.c.l.b16 %v75
    %v115 = vunpack.c.l.b16 %v76
    %v116 = vunpack.c.l.b16 %v77
    %v117 = vunpack.c.l.b16 %v78
    %v118 = vunpack.c.l.b16 %v79
    %v119 = vunpack.c.l.b16 %v80
    %v120 = vunpack.c.l.b16 %v81
    %v121 = vunpack.c.l.b16 %v82
    %v122 = vunpack.c.l.b16 %v83
    %v123 = vunpack.c.l.b16 %v84
    %v124 = vunpack.c.l.b16 %v85
    %v125 = vunpack.c.l.b16 %v86
    %v126 = vunpack.c.l.b16 %v87
    %v127 = vunpack.c.l.b16 %v88
    %v128 = vpack.c.b16 %v113, %v112
    %v129 = vpack.c.b16 %v115, %v114
    %v130 = vpack.c.b16 %v117, %v116
    %v131 = vpack.c.b16 %v119, %v118
    %v132 = vpack.c.b16 %v121, %v120
    %v133 = vpack.c.b16 %v123, %v122
    %v134 = vpack.c.b16 %v125, %v124
    %v135 = vpack.c.b16 %v127, %v126
    %144 = vmatprep.subr.bf16.mxu0 0
    %145 = vmatpush1.bf16.msra.mxu0 %v128
    %146 = vmatprep.subr.bf16.mxu0 0
    %147 = vmatpush1.bf16.msra.mxu0 %v129
    %148 = vmatprep.subr.bf16.mxu0 0
    %149 = vmatpush1.bf16.msra.mxu0 %v130
    %150 = vmatprep.subr.bf16.mxu0 0
    %151 = vmatpush1.bf16.msra.mxu0 %v131
    %152 = vmatprep.subr.bf16.mxu0 0
    %153 = vmatpush1.bf16.msra.mxu0 %v132
    %154 = vmatprep.subr.bf16.mxu0 0
    %155 = vmatpush1.bf16.msra.mxu0 %v133
    %156 = vmatprep.subr.bf16.mxu0 0
    %157 = vmatpush1.bf16.msra.mxu0 %v134
    %158 = vmatprep.subr.bf16.mxu0 0
    %159 = vmatpush1.bf16.msra.mxu0 %v135
    %160 = vmatprep.subr.bf16.mxu0 0
    %161 = vmatpush1.bf16.msra.mxu0 0
    %162 = vmatprep.subr.bf16.mxu0 0
    %163 = vmatpush1.bf16.msra.mxu0 0
    %164 = vmatprep.subr.bf16.mxu0 0
    %165 = vmatpush1.bf16.msra.mxu0 0
    %166 = vmatprep.subr.bf16.mxu0 0
    %167 = vmatpush1.bf16.msra.mxu0 0
    %168 = vmatprep.subr.bf16.mxu0 0
    %169 = vmatpush1.bf16.msra.mxu0 0
    %170 = vmatprep.subr.bf16.mxu0 0
    %171 = vmatpush1.bf16.msra.mxu0 0
    %172 = vmatprep.subr.bf16.mxu0 0
    %173 = vmatpush1.bf16.msra.mxu0 0
    %174 = vmatprep.subr.bf16.mxu0 0
    %175 = vmatpush1.bf16.msra.mxu0 0
    %176 = vmatprep.mubr.bf16.mxu0 0
    %177 = vmatmul.mubr.bf16.gmra.mrb[0].mxu0 %v65
    %v178 = vpop.f32.mrb[0].mxu0
    %v179 = vadd.f32 %v94, %v178
    %v180 = vpop.f32.mrb[0].mxu0
    %v181 = vpop.f32.mrb[0].mxu0
    %v182 = vadd.f32 %v94, %v181
    %v183 = vpop.f32.mrb[0].mxu0
    %184 = vdwg.mxu0
    %v185 = vmax.f32 %v179, 0.0
    %v186 = vmax.f32 %v182, 0.0
    %v187 = vpack.c.bf16 %v186, %v185
    %v188 = vld [vmem:[#allocation7] sm:$0xf]
    %v189 = vld [vmem:[#allocation7 + $0x4] sm:$0xf]
    %v190 = vld [vmem:[#allocation7 + $0x8] sm:$0xf]
    %v191 = vld [vmem:[#allocation7 + $0xc] sm:$0xf]
    %v192 = vld [vmem:[#allocation7 + $0x10] sm:$0xf]
    %v193 = vld [vmem:[#allocation7 + $0x14] sm:$0xf]
    %v194 = vld [vmem:[#allocation7 + $0x18] sm:$0xf]
    %v195 = vld [vmem:[#allocation7 + $0x1c] sm:$0xf]
    %v196 = vld [vmem:[#allocation7 + $0x20] sm:$0xf]
    %v197 = vld [vmem:[#allocation7 + $0x24] sm:$0xf]
    %v198 = vld [vmem:[#allocation7 + $0x28] sm:$0xf]
    %v199 = vld [vmem:[#allocation7 + $0x2c] sm:$0xf]
    %v200 = vld [vmem:[#allocation7 + $0x30] sm:$0xf]
    %v201 = vld [vmem:[#allocation7 + $0x34] sm:$0xf]
    %v202 = vld [vmem:[#allocation7 + $0x38] sm:$0xf]
    %v203 = vld [vmem:[#allocation7 + $0x3c] sm:$0xf]
    %v220 = vunpack.c.l.b16 %v188
    %v221 = vunpack.c.l.b16 %v189
    %v222 = vunpack.c.l.b16 %v190
    %v223 = vunpack.c.l.b16 %v191
    %v224 = vunpack.c.l.b16 %v192
    %v225 = vunpack.c.l.b16 %v193
    %v226 = vunpack.c.l.b16 %v194
    %v227 = vunpack.c.l.b16 %v195
    %v228 = vunpack.c.l.b16 %v196
    %v229 = vunpack.c.l.b16 %v197
    %v230 = vunpack.c.l.b16 %v198
    %v231 = vunpack.c.l.b16 %v199
    %v232 = vunpack.c.l.b16 %v200
    %v233 = vunpack.c.l.b16 %v201
    %v234 = vunpack.c.l.b16 %v202
    %v235 = vunpack.c.l.b16 %v203
    %v236 = vpack.c.b16 %v221, %v220
    %v237 = vpack.c.b16 %v223, %v222
    %v238 = vpack.c.b16 %v225, %v224
    %v239 = vpack.c.b16 %v227, %v226
    %v240 = vpack.c.b16 %v229, %v228
    %v241 = vpack.c.b16 %v231, %v230
    %v242 = vpack.c.b16 %v233, %v232
    %v243 = vpack.c.b16 %v235, %v234
    %252 = vmatprep.subr.bf16.mxu0 0
    %253 = vmatpush1.bf16.msra.mxu0 %v236
    %254 = vmatprep.subr.bf16.mxu0 0
    %255 = vmatpush1.bf16.msra.mxu0 %v237
    %256 = vmatprep.subr.bf16.mxu0 0
    %257 = vmatpush1.bf16.msra.mxu0 %v238
    %258 = vmatprep.subr.bf16.mxu0 0
    %259 = vmatpush1.bf16.msra.mxu0 %v239
    %260 = vmatprep.subr.bf16.mxu0 0
    %261 = vmatpush1.bf16.msra.mxu0 %v240
    %262 = vmatprep.subr.bf16.mxu0 0
    %263 = vmatpush1.bf16.msra.mxu0 %v241
    %264 = vmatprep.subr.bf16.mxu0 0
    %265 = vmatpush1.bf16.msra.mxu0 %v242
    %266 = vmatprep.subr.bf16.mxu0 0
    %267 = vmatpush1.bf16.msra.mxu0 %v243
    %268 = vmatprep.subr.bf16.mxu0 0
    %269 = vmatpush1.bf16.msra.mxu0 0
    %270 = vmatprep.subr.bf16.mxu0 0
    %271 = vmatpush1.bf16.msra.mxu0 0
    %272 = vmatprep.subr.bf16.mxu0 0
    %273 = vmatpush1.bf16.msra.mxu0 0
    %274 = vmatprep.subr.bf16.mxu0 0
    %275 = vmatpush1.bf16.msra.mxu0 0
    %276 = vmatprep.subr.bf16.mxu0 0
    %277 = vmatpush1.bf16.msra.mxu0 0
    %278 = vmatprep.subr.bf16.mxu0 0
    %279 = vmatpush1.bf16.msra.mxu0 0
    %280 = vmatprep.subr.bf16.mxu0 0
    %281 = vmatpush1.bf16.msra.mxu0 0
    %282 = vmatprep.subr.bf16.mxu0 0
    %283 = vmatpush1.bf16.msra.mxu0 0
    %284 = vmatprep.mubr.bf16.mxu0 0
    %285 = vmatmul.mubr.bf16.gmra.mrb[0].mxu0 %v187
    %v286 = vpop.f32.mrb[0].mxu0
    %v287 = vadd.f32 0.0, %v286
    %v288 = vpop.f32.mrb[0].mxu0
    %v289 = vpop.f32.mrb[0].mxu0
    %v290 = vadd.f32 0.0, %v289
    %v291 = vpop.f32.mrb[0].mxu0
    %292 = vdwg.mxu0
    %v293 = vadd.f32 %v71, %v287
    %v294 = vadd.f32 %v71, %v290
    %295 = vst [vmem:[#allocation8] sm:$0xff] %v293
    %296 = vst [vmem:[#allocation8 + $0x8] sm:$0xff] %v294
    // Predicated region
    $region34: #{tpu_custom_call.1} parent=1 // pred_check
      _
    $region35: #{tpu_custom_call.1} parent=1 // pred_check_branch
      %298 = sbr.rel (0) target = $region37
    $region36: #{tpu_custom_call.1} parent=1 // pred_region
      %s300 = ssub.s32 256, 256
      %301 = vsyncadd [#allocation4], %s300
      %s302 = sshll.u32 [#allocation8], 4
      %s303 = int_to_ptr.vmem [resolvable:$true] %s302
      %308 = dma.vmem_to_hbm [thread:$0]  %s303, 256, %s5, [#allocation4], 128, 128, 8
    $region37: #{tpu_custom_call.1} parent=1 // pred_fallthru
      _
    // Predicated region
    $region38: #{tpu_custom_call.1} parent=1 // pred_check
      _
    $region39: #{tpu_custom_call.1} parent=1 // pred_check_branch
      %310 = sbr.rel (0) target = $region41
    $region40: #{tpu_custom_call.1} parent=1 // pred_region
      %311 = dma.done [#allocation4], 256
    $region41: #{tpu_custom_call.1} parent=1 // pred_fallthru
      _
    %312 = vsyncpa [#allocation3], 1
    %313 = vsyncpa [#allocation6], 1
    %314 = vsyncpa [#allocation4], 1

</llo_original>
